<compile_context>
chip_gen: v5e
topology: v5e:2x2
jax: 0.10.0
libtpu: 0.0.40
codegen_flags: <defaults>
</compile_context>

<pallas_src>
import math

import jax
import jax.numpy as jnp
from jax import lax
from jax.experimental import pallas as pl
from jax.experimental.pallas import tpu as pltpu


def _round_up(a, b):
    return (a + b - 1) // b * b


# ----------------------------------------------------------------------------
# Fused Pallas kernel (grid over edge tiles, reduction axis = "arbitrary")
# ----------------------------------------------------------------------------
def citygnn_kernel(x_ref, ea_ref, row_ref, col_ref, colt_ref,
                   w1r_ref, w1c_ref, w1e_ref, b1_ref,
                   w2x_ref, w2a_ref, b2_ref,
                   out_ref, sums_ref, counts_ref):
    """One edge-tile step of the fused CityGNN forward.

    x_ref    : (N, node_h)            node features (full, resident every step)
    ea_ref   : (TE, edge_h)           edge features for this tile
    row_ref  : (TE, 1) int32          source node index per edge
    col_ref  : (TE, 1) int32          target node index per edge
    colt_ref : (1, TE) int32          col again, row-vector layout (for the scatter)
    w1r/w1c/w1e : node_mlp_1 weight split along its input dim
    b1       : (1, gnn_h)
    w2x/w2a  : node_mlp_2 weight split
    b2       : (1, gnn_h)
    out_ref  : (N, gnn_h)             written only on the last grid step
    sums_ref / counts_ref : VMEM accumulators for scatter_mean
    """
    step = pl.program_id(0)
    N = x_ref.shape[0]
    TE = ea_ref.shape[0]

    @pl.when(step == 0)
    def _init():
        sums_ref[...] = jnp.zeros_like(sums_ref)
        counts_ref[...] = jnp.zeros_like(counts_ref)

    x = x_ref[...]                                    # (N, node_h)
    ea = ea_ref[...]                                  # (TE, edge_h)

    # One-hot edge->node incidence matrices (built on the VPU, consumed by the MXU).
    # Padded edges carry index N, which matches nothing -> all-zero rows/cols.
    node_ids = lax.broadcasted_iota(jnp.int32, (TE, N), 1)            # (TE, N)
    onehot_row = (row_ref[...] == node_ids).astype(jnp.float32)       # (TE, N)
    onehot_col = (col_ref[...] == node_ids).astype(jnp.float32)       # (TE, N)
    node_ids_t = lax.broadcasted_iota(jnp.int32, (N, TE), 0)          # (N, TE)
    onehot_col_t = (colt_ref[...] == node_ids_t).astype(jnp.float32)  # (N, TE)

    # Gather x[row], x[col] as MXU matmuls (exact: one-hot rows).
    xr = jnp.dot(onehot_row, x, preferred_element_type=jnp.float32)   # (TE, node_h)
    xc = jnp.dot(onehot_col, x, preferred_element_type=jnp.float32)   # (TE, node_h)

    # node_mlp_1: relu(cat([x[row], x[col], edge_attr]) @ W1 + b1)
    # concat folded into the split weights.
    h1 = (jnp.dot(xr, w1r_ref[...], preferred_element_type=jnp.float32)
          + jnp.dot(xc, w1c_ref[...], preferred_element_type=jnp.float32)
          + jnp.dot(ea, w1e_ref[...], preferred_element_type=jnp.float32)
          + b1_ref[...])
    h1 = jnp.maximum(h1, 0.0)                                         # (TE, gnn_h)

    # scatter_mean over col: accumulate segment sums (incidence^T matmul on the MXU)
    # and per-node counts (XLU lane reduction — free slot).
    sums_ref[...] += jnp.dot(onehot_col_t, h1, preferred_element_type=jnp.float32)
    counts_ref[...] += jnp.sum(onehot_col_t, axis=1, keepdims=True)

    @pl.when(step == pl.num_programs(0) - 1)
    def _finalize():
        # Nodes with no in-edges -> 0 (matches torch_scatter.scatter_mean).
        agg = sums_ref[...] / jnp.maximum(counts_ref[...], 1.0)       # (N, gnn_h)
        # node_mlp_2: relu(cat([x, agg]) @ W2 + b2), concat folded into split weights.
        h2 = (jnp.dot(x, w2x_ref[...], preferred_element_type=jnp.float32)
              + jnp.dot(agg, w2a_ref[...], preferred_element_type=jnp.float32)
              + b2_ref[...])
        out_ref[...] = jnp.maximum(h2, 0.0)


# ----------------------------------------------------------------------------
# Wrapper
# ----------------------------------------------------------------------------
def citygnn_forward(x, edge_index, edge_attr, params):
    """x: (N, node_h), edge_index: (2, E) int, edge_attr: (E, edge_h)."""
    N, node_h = x.shape
    E, edge_h = edge_attr.shape
    gnn_h = params["b1"].shape[-1]

    # Edge-tile size: single sublane-aligned tile when small; otherwise 256-wide
    # tiles (multiple of both 8 and 128 so every BlockSpec satisfies the (8,128)
    # divisibility rule, including the (1, TE) col row-vector).
    if E <= 256:
        TE = max(_round_up(E, 8), 8)
        E_pad = TE
    else:
        TE = 256
        E_pad = _round_up(E, TE)

    pad = E_pad - E
    row = edge_index[0].astype(jnp.int32)
    col = edge_index[1].astype(jnp.int32)
    if pad:
        # Padded edges point at node index N -> one-hot rows are all zero,
        # so they contribute nothing to sums/counts.
        row = jnp.concatenate([row, jnp.full((pad,), N, jnp.int32)])
        col = jnp.concatenate([col, jnp.full((pad,), N, jnp.int32)])
        edge_attr = jnp.concatenate(
            [edge_attr, jnp.zeros((pad, edge_h), edge_attr.dtype)], axis=0)

    row2 = row.reshape(E_pad, 1)
    col2 = col.reshape(E_pad, 1)
    col_t = col.reshape(1, E_pad)

    w1, b1 = params["w1"], params["b1"]              # (2*node_h+edge_h, gnn_h), (1, gnn_h)
    w2, b2 = params["w2"], params["b2"]              # (node_h+gnn_h, gnn_h),    (1, gnn_h)
    w1r = w1[:node_h]
    w1c = w1[node_h:2 * node_h]
    w1e = w1[2 * node_h:]
    w2x = w2[:node_h]
    w2a = w2[node_h:]

    full = lambda e: (0, 0)
    grid = (E_pad // TE,)

    # TODO(synk): if N ever grows large enough that the (TE, N) incidence tiles no
    # longer fit VMEM, add a second grid axis tiling the node dimension as well.
    return pl.pallas_call(
        citygnn_kernel,
        out_shape=jax.ShapeDtypeStruct((N, gnn_h), jnp.float32),
        grid=grid,
        in_specs=[
            pl.BlockSpec((N, node_h), full),              # x (resident)
            pl.BlockSpec((TE, edge_h), lambda e: (e, 0)),  # edge_attr tile
            pl.BlockSpec((TE, 1), lambda e: (e, 0)),       # row tile
            pl.BlockSpec((TE, 1), lambda e: (e, 0)),       # col tile
            pl.BlockSpec((1, TE), lambda e: (0, e)),       # col (row-vector) tile
            pl.BlockSpec((node_h, gnn_h), full),           # w1r
            pl.BlockSpec((node_h, gnn_h), full),           # w1c
            pl.BlockSpec((edge_h, gnn_h), full),           # w1e
            pl.BlockSpec((1, gnn_h), full),                # b1
            pl.BlockSpec((node_h, gnn_h), full),           # w2x
            pl.BlockSpec((gnn_h, gnn_h), full),            # w2a
            pl.BlockSpec((1, gnn_h), full),                # b2
        ],
        out_specs=pl.BlockSpec((N, gnn_h), full),
        scratch_shapes=[pltpu.VMEM((N, gnn_h), jnp.float32),   # segment sums
                        pltpu.VMEM((N, 1), jnp.float32)],       # segment counts
        compiler_params=pltpu.CompilerParams(
            dimension_semantics=("arbitrary",)),
    )(x, edge_attr, row2, col2, col_t, w1r, w1c, w1e, b1, w2x, w2a, b2)


# ----------------------------------------------------------------------------
# PyTorch-style parameter init (Linear: uniform(-1/sqrt(fan_in), 1/sqrt(fan_in)))
# ----------------------------------------------------------------------------
def init_params(key, node_h, edge_h, gnn_h):
    d1 = 2 * node_h + edge_h
    d2 = node_h + gnn_h
    k1 = 1.0 / math.sqrt(d1)
    k2 = 1.0 / math.sqrt(d2)
    key, a, b, c, d = jax.random.split(key, 5)
    return {
        # stored transposed relative to PyTorch (in, out) so kernels do x @ W.
        "w1": jax.random.uniform(a, (d1, gnn_h), jnp.float32, -k1, k1),
        "b1": jax.random.uniform(b, (1, gnn_h), jnp.float32, -k1, k1),
        "w2": jax.random.uniform(c, (d2, gnn_h), jnp.float32, -k2, k2),
        "b2": jax.random.uniform(d, (1, gnn_h), jnp.float32, -k2, k2),
    }


# ----------------------------------------------------------------------------
# Pure-JAX reference (same math, no Pallas)
# ----------------------------------------------------------------------------
def ref_forward(x, edge_index, edge_attr, params):
    row, col = edge_index[0], edge_index[1]
    N = x.shape[0]
    out = jnp.concatenate([x[row], x[col], edge_attr], axis=1)
    out = jnp.maximum(out @ params["w1"] + params["b1"], 0.0)
    sums = jax.ops.segment_sum(out, col, num_segments=N)
    counts = jax.ops.segment_sum(jnp.ones((col.shape[0],), jnp.float32), col,
                                 num_segments=N)
    mean = sums / jnp.maximum(counts, 1.0)[:, None]
    out = jnp.concatenate([x, mean], axis=1)
    return jnp.maximum(out @ params["w2"] + params["b2"], 0.0)


if __name__ == "__main__":
    NODE_H, EDGE_H, GNN_H = 8, 4, 32

    def run_case(case_key, n_nodes, n_edges):
        kx, ke, ki, kp = jax.random.split(case_key, 4)
        x = jax.random.normal(kx, (n_nodes, NODE_H), jnp.float32)
        edge_attr = jax.random.normal(ke, (n_edges, EDGE_H), jnp.float32)
        edge_index = jax.random.randint(ki, (2, n_edges), 0, n_nodes, dtype=jnp.int32)
        params = init_params(kp, NODE_H, EDGE_H, GNN_H)

        out = citygnn_forward(x, edge_index, edge_attr, params)
        jax.block_until_ready(out)

        ref = ref_forward(x, edge_index, edge_attr, params)
        assert out.shape == (n_nodes, GNN_H)
        assert jnp.max(jnp.abs(out - ref)) < 1e-3

    key = jax.random.PRNGKey(0)
    k1, k2 = jax.random.split(key)
    run_case(k1, 16, 37)    # single edge-tile path (exercises sublane padding)
    run_case(k2, 24, 300)   # multi-tile grid path (TE=256, 2 edge tiles + padding)

    print("KERNEL_OK")
</pallas_src>

<mosaic_0001>
module attributes {stable_mosaic.version = 11 : i64} {
  func.func @citygnn_kernel(%arg0: i32, %arg1: memref<16x8xf32, #tpu.memory_space<vmem>>, %arg2: memref<40x4xf32, #tpu.memory_space<vmem>>, %arg3: memref<40x1xi32, #tpu.memory_space<vmem>>, %arg4: memref<40x1xi32, #tpu.memory_space<vmem>>, %arg5: memref<1x40xi32, #tpu.memory_space<vmem>>, %arg6: memref<8x32xf32, #tpu.memory_space<vmem>>, %arg7: memref<8x32xf32, #tpu.memory_space<vmem>>, %arg8: memref<4x32xf32, #tpu.memory_space<vmem>>, %arg9: memref<1x32xf32, #tpu.memory_space<vmem>>, %arg10: memref<8x32xf32, #tpu.memory_space<vmem>>, %arg11: memref<32x32xf32, #tpu.memory_space<vmem>>, %arg12: memref<1x32xf32, #tpu.memory_space<vmem>>, %arg13: memref<16x32xf32, #tpu.memory_space<vmem>>, %arg14: memref<16x32xf32, #tpu.memory_space<vmem>>, %arg15: memref<16x1xf32, #tpu.memory_space<vmem>>) attributes {dimension_semantics = [#tpu.dimension_semantics<arbitrary>], iteration_bounds = array<i64: 1>, scalar_prefetch = 0 : i64, scratch_operands = 2 : i64, tpu.core_type = #tpu.core_type<tc>, window_params = [{pipeline_mode = #tpu.pipeline_mode<synchronous>, transform_indices = @transform_0, window_bounds = array<i64: 16, 8>}, {transform_indices = @transform_1, window_bounds = array<i64: 40, 4>}, {transform_indices = @transform_2, window_bounds = array<i64: 40, 1>}, {transform_indices = @transform_3, window_bounds = array<i64: 40, 1>}, {transform_indices = @transform_4, window_bounds = array<i64: 1, 40>}, {pipeline_mode = #tpu.pipeline_mode<synchronous>, transform_indices = @transform_5, window_bounds = array<i64: 8, 32>}, {pipeline_mode = #tpu.pipeline_mode<synchronous>, transform_indices = @transform_6, window_bounds = array<i64: 8, 32>}, {pipeline_mode = #tpu.pipeline_mode<synchronous>, transform_indices = @transform_7, window_bounds = array<i64: 4, 32>}, {pipeline_mode = #tpu.pipeline_mode<synchronous>, transform_indices = @transform_8, window_bounds = array<i64: 1, 32>}, {pipeline_mode = #tpu.pipeline_mode<synchronous>, transform_indices = @transform_9, window_bounds = array<i64: 8, 32>}, {pipeline_mode = #tpu.pipeline_mode<synchronous>, transform_indices = @transform_10, window_bounds = array<i64: 32, 32>}, {pipeline_mode = #tpu.pipeline_mode<synchronous>, transform_indices = @transform_11, window_bounds = array<i64: 1, 32>}, {pipeline_mode = #tpu.pipeline_mode<synchronous>, transform_indices = @transform_12, window_bounds = array<i64: 16, 32>}]} {
    %c0_i32 = arith.constant 0 : i32
    %0 = arith.cmpi eq, %arg0, %c0_i32 : i32
    %1 = arith.extui %0 : i1 to i32
    %c0_i32_0 = arith.constant 0 : i32
    %2 = arith.cmpi ne, %1, %c0_i32_0 : i32
    scf.if %2 {
      %cst_35 = arith.constant 0.000000e+00 : f32
      %49 = vector.broadcast %cst_35 : f32 to vector<16x32xf32>
      %c0_36 = arith.constant 0 : index
      %c0_37 = arith.constant 0 : index
      %50 = vector.load %arg14[%c0_36, %c0_37] : memref<16x32xf32, #tpu.memory_space<vmem>>, vector<16x32xf32>
      tpu.vector_store %arg14[%c0_36, %c0_37], %49 {strides = array<i32>} : memref<16x32xf32, #tpu.memory_space<vmem>>, vector<16x32xf32>,
      %cst_38 = arith.constant 0.000000e+00 : f32
      %51 = vector.broadcast %cst_38 : f32 to vector<16x1xf32>
      %c0_39 = arith.constant 0 : index
      %c0_40 = arith.constant 0 : index
      %52 = vector.load %arg15[%c0_39, %c0_40] : memref<16x1xf32, #tpu.memory_space<vmem>>, vector<16x1xf32>
      tpu.vector_store %arg15[%c0_39, %c0_40], %51 {strides = array<i32>} : memref<16x1xf32, #tpu.memory_space<vmem>>, vector<16x1xf32>,
    } else {
    }
    %c0 = arith.constant 0 : index
    %c0_1 = arith.constant 0 : index
    %3 = vector.load %arg1[%c0, %c0_1] : memref<16x8xf32, #tpu.memory_space<vmem>>, vector<16x8xf32>
    %c0_2 = arith.constant 0 : index
    %c0_3 = arith.constant 0 : index
    %4 = vector.load %arg2[%c0_2, %c0_3] : memref<40x4xf32, #tpu.memory_space<vmem>>, vector<40x4xf32>
    %5 = tpu.iota {dimensions = array<i32: 1>} : vector<40x16xi32>
    %c0_4 = arith.constant 0 : index
    %c0_5 = arith.constant 0 : index
    %6 = vector.load %arg3[%c0_4, %c0_5] : memref<40x1xi32, #tpu.memory_space<vmem>>, vector<40x1xi32>
    %7 = vector.broadcast %6 : vector<40x1xi32> to vector<40x16xi32>
    %8 = arith.cmpi eq, %7, %5 : vector<40x16xi32>
    %9 = arith.extui %8 : vector<40x16xi1> to vector<40x16xi32>
    %10 = arith.sitofp %9 : vector<40x16xi32> to vector<40x16xf32>
    %c0_6 = arith.constant 0 : index
    %c0_7 = arith.constant 0 : index
    %11 = vector.load %arg4[%c0_6, %c0_7] : memref<40x1xi32, #tpu.memory_space<vmem>>, vector<40x1xi32>
    %12 = vector.broadcast %11 : vector<40x1xi32> to vector<40x16xi32>
    %13 = arith.cmpi eq, %12, %5 : vector<40x16xi32>
    %14 = arith.extui %13 : vector<40x16xi1> to vector<40x16xi32>
    %15 = arith.sitofp %14 : vector<40x16xi32> to vector<40x16xf32>
    %16 = tpu.iota {dimensions = array<i32: 0>} : vector<16x40xi32>
    %c0_8 = arith.constant 0 : index
    %c0_9 = arith.constant 0 : index
    %17 = vector.load %arg5[%c0_8, %c0_9] : memref<1x40xi32, #tpu.memory_space<vmem>>, vector<1x40xi32>
    %18 = vector.broadcast %17 : vector<1x40xi32> to vector<16x40xi32>
    %19 = arith.cmpi eq, %18, %16 : vector<16x40xi32>
    %20 = arith.extui %19 : vector<16x40xi1> to vector<16x40xi32>
    %21 = arith.sitofp %20 : vector<16x40xi32> to vector<16x40xf32>
    %cst = arith.constant dense<0.000000e+00> : vector<40x8xf32>
    %22 = tpu.matmul %10, %3, %cst {dimension_numbers = #tpu.dot_dimension_numbers<[1], [0], [0], [1], [0, 0, 1, 1], [], []>} : vector<40x16xf32>, vector<16x8xf32>, vector<40x8xf32> -> vector<40x8xf32>
    %cst_10 = arith.constant dense<0.000000e+00> : vector<40x8xf32>
    %23 = tpu.matmul %15, %3, %cst_10 {dimension_numbers = #tpu.dot_dimension_numbers<[1], [0], [0], [1], [0, 0, 1, 1], [], []>} : vector<40x16xf32>, vector<16x8xf32>, vector<40x8xf32> -> vector<40x8xf32>
    %c0_11 = arith.constant 0 : index
    %c0_12 = arith.constant 0 : index
    %24 = vector.load %arg6[%c0_11, %c0_12] : memref<8x32xf32, #tpu.memory_space<vmem>>, vector<8x32xf32>
    %cst_13 = arith.constant dense<0.000000e+00> : vector<40x32xf32>
    %25 = tpu.matmul %22, %24, %cst_13 {dimension_numbers = #tpu.dot_dimension_numbers<[1], [0], [0], [1], [0, 0, 1, 1], [], []>} : vector<40x8xf32>, vector<8x32xf32>, vector<40x32xf32> -> vector<40x32xf32>
    %c0_14 = arith.constant 0 : index
    %c0_15 = arith.constant 0 : index
    %26 = vector.load %arg7[%c0_14, %c0_15] : memref<8x32xf32, #tpu.memory_space<vmem>>, vector<8x32xf32>
    %cst_16 = arith.constant dense<0.000000e+00> : vector<40x32xf32>
    %27 = tpu.matmul %23, %26, %cst_16 {dimension_numbers = #tpu.dot_dimension_numbers<[1], [0], [0], [1], [0, 0, 1, 1], [], []>} : vector<40x8xf32>, vector<8x32xf32>, vector<40x32xf32> -> vector<40x32xf32>
    %28 = arith.addf %25, %27 : vector<40x32xf32>
    %c0_17 = arith.constant 0 : index
    %c0_18 = arith.constant 0 : index
    %29 = vector.load %arg8[%c0_17, %c0_18] : memref<4x32xf32, #tpu.memory_space<vmem>>, vector<4x32xf32>
    %cst_19 = arith.constant dense<0.000000e+00> : vector<40x32xf32>
    %30 = tpu.matmul %4, %29, %cst_19 {dimension_numbers = #tpu.dot_dimension_numbers<[1], [0], [0], [1], [0, 0, 1, 1], [], []>} : vector<40x4xf32>, vector<4x32xf32>, vector<40x32xf32> -> vector<40x32xf32>
    %31 = arith.addf %28, %30 : vector<40x32xf32>
    %c0_20 = arith.constant 0 : index
    %c0_21 = arith.constant 0 : index
    %32 = vector.load %arg9[%c0_20, %c0_21] : memref<1x32xf32, #tpu.memory_space<vmem>>, vector<1x32xf32>
    %33 = vector.broadcast %32 : vector<1x32xf32> to vector<40x32xf32>
    %34 = arith.addf %31, %33 : vector<40x32xf32>
    %cst_22 = arith.constant 0.000000e+00 : f32
    %35 = vector.broadcast %cst_22 : f32 to vector<40x32xf32>
    %36 = arith.maximumf %34, %35 : vector<40x32xf32>
    %c0_23 = arith.constant 0 : index
    %c0_24 = arith.constant 0 : index
    %37 = vector.load %arg14[%c0_23, %c0_24] : memref<16x32xf32, #tpu.memory_space<vmem>>, vector<16x32xf32>
    %cst_25 = arith.constant dense<0.000000e+00> : vector<16x32xf32>
    %38 = tpu.matmul %21, %36, %cst_25 {dimension_numbers = #tpu.dot_dimension_numbers<[1], [0], [0], [1], [0, 0, 1, 1], [], []>} : vector<16x40xf32>, vector<40x32xf32>, vector<16x32xf32> -> vector<16x32xf32>
    %39 = arith.addf %37, %38 : vector<16x32xf32>
    %c0_26 = arith.constant 0 : index
    %c0_27 = arith.constant 0 : index
    %40 = vector.load %arg14[%c0_26, %c0_27] : memref<16x32xf32, #tpu.memory_space<vmem>>, vector<16x32xf32>
    tpu.vector_store %arg14[%c0_26, %c0_27], %39 {strides = array<i32>} : memref<16x32xf32, #tpu.memory_space<vmem>>, vector<16x32xf32>,
    %c0_28 = arith.constant 0 : index
    %c0_29 = arith.constant 0 : index
    %41 = vector.load %arg15[%c0_28, %c0_29] : memref<16x1xf32, #tpu.memory_space<vmem>>, vector<16x1xf32>
    %cst_30 = arith.constant dense<0.000000e+00> : vector<16xf32>
    %42 = vector.multi_reduction <add>, %21, %cst_30 [1] : vector<16x40xf32> to vector<16xf32>
    %43 = vector.shape_cast %42 : vector<16xf32> to vector<16x1xf32>
    %44 = arith.addf %41, %43 : vector<16x1xf32>
    %c0_31 = arith.constant 0 : index
    %c0_32 = arith.constant 0 : index
    %45 = vector.load %arg15[%c0_31, %c0_32] : memref<16x1xf32, #tpu.memory_space<vmem>>, vector<16x1xf32>
    tpu.vector_store %arg15[%c0_31, %c0_32], %44 {strides = array<i32>} : memref<16x1xf32, #tpu.memory_space<vmem>>, vector<16x1xf32>,
    %c0_i32_33 = arith.constant 0 : i32
    %46 = arith.cmpi eq, %arg0, %c0_i32_33 : i32
    %47 = arith.extui %46 : i1 to i32
    %c0_i32_34 = arith.constant 0 : i32
    %48 = arith.cmpi ne, %47, %c0_i32_34 : i32
    scf.if %48 {
      %c0_35 = arith.constant 0 : index
      %c0_36 = arith.constant 0 : index
      %49 = vector.load %arg14[%c0_35, %c0_36] : memref<16x32xf32, #tpu.memory_space<vmem>>, vector<16x32xf32>
      %c0_37 = arith.constant 0 : index
      %c0_38 = arith.constant 0 : index
      %50 = vector.load %arg15[%c0_37, %c0_38] : memref<16x1xf32, #tpu.memory_space<vmem>>, vector<16x1xf32>
      %cst_39 = arith.constant 1.000000e+00 : f32
      %51 = vector.broadcast %cst_39 : f32 to vector<16x1xf32>
      %52 = arith.maximumf %50, %51 : vector<16x1xf32>
      %53 = vector.broadcast %52 : vector<16x1xf32> to vector<16x32xf32>
      %54 = arith.divf %49, %53 : vector<16x32xf32>
      %c0_40 = arith.constant 0 : index
      %c0_41 = arith.constant 0 : index
      %55 = vector.load %arg10[%c0_40, %c0_41] : memref<8x32xf32, #tpu.memory_space<vmem>>, vector<8x32xf32>
      %cst_42 = arith.constant dense<0.000000e+00> : vector<16x32xf32>
      %56 = tpu.matmul %3, %55, %cst_42 {dimension_numbers = #tpu.dot_dimension_numbers<[1], [0], [0], [1], [0, 0, 1, 1], [], []>} : vector<16x8xf32>, vector<8x32xf32>, vector<16x32xf32> -> vector<16x32xf32>
      %c0_43 = arith.constant 0 : index
      %c0_44 = arith.constant 0 : index
      %57 = vector.load %arg11[%c0_43, %c0_44] : memref<32x32xf32, #tpu.memory_space<vmem>>, vector<32x32xf32>
      %cst_45 = arith.constant dense<0.000000e+00> : vector<16x32xf32>
      %58 = tpu.matmul %54, %57, %cst_45 {dimension_numbers = #tpu.dot_dimension_numbers<[1], [0], [0], [1], [0, 0, 1, 1], [], []>} : vector<16x32xf32>, vector<32x32xf32>, vector<16x32xf32> -> vector<16x32xf32>
      %59 = arith.addf %56, %58 : vector<16x32xf32>
      %c0_46 = arith.constant 0 : index
      %c0_47 = arith.constant 0 : index
      %60 = vector.load %arg12[%c0_46, %c0_47] : memref<1x32xf32, #tpu.memory_space<vmem>>, vector<1x32xf32>
      %61 = vector.broadcast %60 : vector<1x32xf32> to vector<16x32xf32>
      %62 = arith.addf %59, %61 : vector<16x32xf32>
      %cst_48 = arith.constant 0.000000e+00 : f32
      %63 = vector.broadcast %cst_48 : f32 to vector<16x32xf32>
      %64 = arith.maximumf %62, %63 : vector<16x32xf32>
      %c0_49 = arith.constant 0 : index
      %c0_50 = arith.constant 0 : index
      %65 = vector.load %arg13[%c0_49, %c0_50] : memref<16x32xf32, #tpu.memory_space<vmem>>, vector<16x32xf32>
      tpu.vector_store %arg13[%c0_49, %c0_50], %64 {strides = array<i32>} : memref<16x32xf32, #tpu.memory_space<vmem>>, vector<16x32xf32>,
    } else {
    }
    return
  }
  func.func @transform_0(%arg0: i32) -> (i32, i32) {
    %c0_i32 = arith.constant 0 : i32
    %c0_i32_0 = arith.constant 0 : i32
    %c0_i32_1 = arith.constant 0 : i32
    return %c0_i32, %c0_i32_0 : i32, i32
  }
  func.func @transform_1(%arg0: i32) -> (i32, i32) {
    %c0_i32 = arith.constant 0 : i32
    %c0_i32_0 = arith.constant 0 : i32
    return %arg0, %c0_i32 : i32, i32
  }
  func.func @transform_2(%arg0: i32) -> (i32, i32) {
    %c0_i32 = arith.constant 0 : i32
    %c0_i32_0 = arith.constant 0 : i32
    return %arg0, %c0_i32 : i32, i32
  }
  func.func @transform_3(%arg0: i32) -> (i32, i32) {
    %c0_i32 = arith.constant 0 : i32
    %c0_i32_0 = arith.constant 0 : i32
    return %arg0, %c0_i32 : i32, i32
  }
  func.func @transform_4(%arg0: i32) -> (i32, i32) {
    %c0_i32 = arith.constant 0 : i32
    %c0_i32_0 = arith.constant 0 : i32
    return %c0_i32, %arg0 : i32, i32
  }
  func.func @transform_5(%arg0: i32) -> (i32, i32) {
    %c0_i32 = arith.constant 0 : i32
    %c0_i32_0 = arith.constant 0 : i32
    %c0_i32_1 = arith.constant 0 : i32
    return %c0_i32, %c0_i32_0 : i32, i32
  }
  func.func @transform_6(%arg0: i32) -> (i32, i32) {
    %c0_i32 = arith.constant 0 : i32
    %c0_i32_0 = arith.constant 0 : i32
    %c0_i32_1 = arith.constant 0 : i32
    return %c0_i32, %c0_i32_0 : i32, i32
  }
  func.func @transform_7(%arg0: i32) -> (i32, i32) {
    %c0_i32 = arith.constant 0 : i32
    %c0_i32_0 = arith.constant 0 : i32
    %c0_i32_1 = arith.constant 0 : i32
    return %c0_i32, %c0_i32_0 : i32, i32
  }
  func.func @transform_8(%arg0: i32) -> (i32, i32) {
    %c0_i32 = arith.constant 0 : i32
    %c0_i32_0 = arith.constant 0 : i32
    %c0_i32_1 = arith.constant 0 : i32
    return %c0_i32, %c0_i32_0 : i32, i32
  }
  func.func @transform_9(%arg0: i32) -> (i32, i32) {
    %c0_i32 = arith.constant 0 : i32
    %c0_i32_0 = arith.constant 0 : i32
    %c0_i32_1 = arith.constant 0 : i32
    return %c0_i32, %c0_i32_0 : i32, i32
  }
  func.func @transform_10(%arg0: i32) -> (i32, i32) {
    %c0_i32 = arith.constant 0 : i32
    %c0_i32_0 = arith.constant 0 : i32
    %c0_i32_1 = arith.constant 0 : i32
    return %c0_i32, %c0_i32_0 : i32, i32
  }
  func.func @transform_11(%arg0: i32) -> (i32, i32) {
    %c0_i32 = arith.constant 0 : i32
    %c0_i32_0 = arith.constant 0 : i32
    %c0_i32_1 = arith.constant 0 : i32
    return %c0_i32, %c0_i32_0 : i32, i32
  }
  func.func @transform_12(%arg0: i32) -> (i32, i32) {
    %c0_i32 = arith.constant 0 : i32
    %c0_i32_0 = arith.constant 0 : i32
    %c0_i32_1 = arith.constant 0 : i32
    return %c0_i32, %c0_i32_0 : i32, i32
  }
}

</mosaic_0001>

<llo_original>
// kernel: tpu_custom_call.1
$region0: #{tpu_custom_call.1}
  #allocation0 [shape = 'u32[]', space=smem, size = 0x4, offset = 0x4, fixed_abs, tag = 'smem constant byte address 0x4 - core index']
  #allocation1 [shape = 'u32[72,128]{1,0:T(1,128)}', space=vmem, size = 0x9000, scoped, tag = 'internal scratch']
  #allocation2 [shape = 'f32[16,32]{1,0:T(8,128)}', space=vmem, size = 0x2000, scoped, tag = 'scratch operand']
  #allocation3 [shape = 'f32[16,1]{1,0:T(8,128)}', space=vmem, size = 0x2000, scoped, tag = 'scratch operand']
  %s0 = inlined_call_operand.vmem [shape: f32[16,8], index: 0, kind: input, shape index: {}]
  %s1 = inlined_call_operand.vmem [shape: f32[40,4], index: 1, kind: input, shape index: {}]
  %s2 = inlined_call_operand.vmem [shape: s32[40,1], index: 2, kind: input, shape index: {}]
  %s3 = inlined_call_operand.vmem [shape: s32[40,1], index: 3, kind: input, shape index: {}]
  %s4 = inlined_call_operand.vmem [shape: s32[1,40], index: 4, kind: input, shape index: {}]
  %s5 = inlined_call_operand.vmem [shape: f32[8,32], index: 5, kind: input, shape index: {}]
  %s6 = inlined_call_operand.vmem [shape: f32[8,32], index: 6, kind: input, shape index: {}]
  %s7 = inlined_call_operand.vmem [shape: f32[4,32], index: 7, kind: input, shape index: {}]
  %s8 = inlined_call_operand.vmem [shape: f32[1,32], index: 8, kind: input, shape index: {}]
  %s9 = inlined_call_operand.vmem [shape: f32[8,32], index: 9, kind: input, shape index: {}]
  %s10 = inlined_call_operand.vmem [shape: f32[32,32], index: 10, kind: input, shape index: {}]
  %s11 = inlined_call_operand.vmem [shape: f32[1,32], index: 11, kind: input, shape index: {}]
  %s12 = inlined_call_operand.hbm [shape: f32[16,32], index: 12, kind: output, shape index: {}]
  %s13 = sld [smem:[#allocation0]]
  $region66: #{tpu_custom_call.1} parent=0
    _
  %s15 = ssub.s32 1, %s13
  %s16 = scalar_select 0, %s15, %s13
  $region1: #{tpu_custom_call.1} parent=0
    #allocation4 [shape = 'u8[8192]{0}', space=vmem, size = 0x2000, scoped, tag = 'output window, operand 0, single buffered']
    #allocation5 [shape = 's32[1]{0}', space=sflag, size = 0x4, scoped, tag = 'scoped memory for tpu_custom_call.1']
    %17 = vsyncpa [#allocation5], 0
    // Predicated region
    $region2: #{tpu_custom_call.1} parent=1 // pred_check
      _
    $region3: #{tpu_custom_call.1} parent=1 // pred_check_branch
      %19 = sbr.rel (0) target = $region5
    $region4: #{tpu_custom_call.1} parent=1 // pred_region
      _
    $region5: #{tpu_custom_call.1} parent=1 // pred_fallthru
      _
    // Predicated region
    $region6: #{tpu_custom_call.1} parent=1 // pred_check
      _
    $region7: #{tpu_custom_call.1} parent=1 // pred_check_branch
      %21 = sbr.rel (0) target = $region9
    $region8: #{tpu_custom_call.1} parent=1 // pred_region
      _
    $region9: #{tpu_custom_call.1} parent=1 // pred_fallthru
      _
    // Predicated region
    $region10: #{tpu_custom_call.1} parent=1 // pred_check
      _
    $region11: #{tpu_custom_call.1} parent=1 // pred_check_branch
      %23 = sbr.rel (0) target = $region13
    $region12: #{tpu_custom_call.1} parent=1 // pred_region
      _
    $region13: #{tpu_custom_call.1} parent=1 // pred_fallthru
      _
    // Predicated region
    $region14: #{tpu_custom_call.1} parent=1 // pred_check
      _
    $region15: #{tpu_custom_call.1} parent=1 // pred_check_branch
      %25 = sbr.rel (0) target = $region17
    $region16: #{tpu_custom_call.1} parent=1 // pred_region
      _
    $region17: #{tpu_custom_call.1} parent=1 // pred_fallthru
      _
    // Predicated region
    $region18: #{tpu_custom_call.1} parent=1 // pred_check
      _
    $region19: #{tpu_custom_call.1} parent=1 // pred_check_branch
      %27 = sbr.rel (0) target = $region21
    $region20: #{tpu_custom_call.1} parent=1 // pred_region
      _
    $region21: #{tpu_custom_call.1} parent=1 // pred_fallthru
      _
    // Predicated region
    $region22: #{tpu_custom_call.1} parent=1 // pred_check
      _
    $region23: #{tpu_custom_call.1} parent=1 // pred_check_branch
      %29 = sbr.rel (0) target = $region25
    $region24: #{tpu_custom_call.1} parent=1 // pred_region
      _
    $region25: #{tpu_custom_call.1} parent=1 // pred_fallthru
      _
    // Predicated region
    $region26: #{tpu_custom_call.1} parent=1 // pred_check
      _
    $region27: #{tpu_custom_call.1} parent=1 // pred_check_branch
      %31 = sbr.rel (0) target = $region29
    $region28: #{tpu_custom_call.1} parent=1 // pred_region
      _
    $region29: #{tpu_custom_call.1} parent=1 // pred_fallthru
      _
    // Predicated region
    $region30: #{tpu_custom_call.1} parent=1 // pred_check
      _
    $region31: #{tpu_custom_call.1} parent=1 // pred_check_branch
      %33 = sbr.rel (0) target = $region33
    $region32: #{tpu_custom_call.1} parent=1 // pred_region
      _
    $region33: #{tpu_custom_call.1} parent=1 // pred_fallthru
      _
    // Predicated region
    $region34: #{tpu_custom_call.1} parent=1 // pred_check
      _
    $region35: #{tpu_custom_call.1} parent=1 // pred_check_branch
      %35 = sbr.rel (0) target = $region37
    $region36: #{tpu_custom_call.1} parent=1 // pred_region
      _
    $region37: #{tpu_custom_call.1} parent=1 // pred_fallthru
      _
    // Predicated region
    $region38: #{tpu_custom_call.1} parent=1 // pred_check
      _
    $region39: #{tpu_custom_call.1} parent=1 // pred_check_branch
      %37 = sbr.rel (0) target = $region41
    $region40: #{tpu_custom_call.1} parent=1 // pred_region
      _
    $region41: #{tpu_custom_call.1} parent=1 // pred_fallthru
      _
    // Predicated region
    $region42: #{tpu_custom_call.1} parent=1 // pred_check
      _
    $region43: #{tpu_custom_call.1} parent=1 // pred_check_branch
      %39 = sbr.rel (0) target = $region45
    $region44: #{tpu_custom_call.1} parent=1 // pred_region
      _
    $region45: #{tpu_custom_call.1} parent=1 // pred_fallthru
      _
    // Predicated region
    $region46: #{tpu_custom_call.1} parent=1 // pred_check
      _
    $region47: #{tpu_custom_call.1} parent=1 // pred_check_branch
      %41 = sbr.rel (0) target = $region49
    $region48: #{tpu_custom_call.1} parent=1 // pred_region
      _
    $region49: #{tpu_custom_call.1} parent=1 // pred_fallthru
      _
    %p42 = scmp.eq.s32.totalorder 0, 0
    // Predicated region
    $region50: #{tpu_custom_call.1} parent=1 // pred_check
      %p43 = pneg %p42
    $region51: #{tpu_custom_call.1} parent=1 // pred_check_branch
      %45 = sbr.rel (%p43) target = $region53
    $region52: #{tpu_custom_call.1} parent=1 // pred_region
      %vm46 = vcmask 261120
      %47 = vst.msk [vmem:[#allocation2] sm:$0xff] %vm46, 0.0
      %48 = vst.msk [vmem:[#allocation2 + $0x8] sm:$0xff] %vm46, 0.0
      %vm49 = vcmask 7168
      %50 = vst.msk [vmem:[#allocation3] sm:$0xff] %vm49, 0.0
      %51 = vst.msk [vmem:[#allocation3 + $0x8] sm:$0xff] %vm49, 0.0
    $region53: #{tpu_custom_call.1} parent=1 // pred_fallthru
      _
    %v52 = vld [vmem:[%s0] sm:$0xff]
    %v53 = vld [vmem:[%s0 + $0x8] sm:$0xff]
    %v54 = vld [vmem:[%s1] sm:$0xff]
    %v55 = vld [vmem:[%s1 + $0x8] sm:$0xff]
    %v56 = vld [vmem:[%s1 + $0x10] sm:$0xff]
    %v57 = vld [vmem:[%s1 + $0x18] sm:$0xff]
    %v58 = vld [vmem:[%s1 + $0x20] sm:$0xff]
    %v59 = vlaneseq
    %v60 = vand.u32 %v59, 127
    %v61 = vld [vmem:[%s2] sm:$0xff]
    %v62 = vld [vmem:[%s2 + $0x8] sm:$0xff]
    %v63 = vld [vmem:[%s2 + $0x10] sm:$0xff]
    %v64 = vld [vmem:[%s2 + $0x18] sm:$0xff]
    %v65 = vld [vmem:[%s2 + $0x20] sm:$0xff]
    %66 = vset.pattern.permute.xlu0 0
    %67 = vperm.xlu0 %66, %v61
    %v68 = vpop.permute.xlu0 %67
    %69 = vset.pattern.permute.xlu0 0
    %70 = vperm.xlu0 %69, %v62
    %v71 = vpop.permute.xlu0 %70
    %72 = vset.pattern.permute.xlu0 0
    %73 = vperm.xlu0 %72, %v63
    %v74 = vpop.permute.xlu0 %73
    %75 = vset.pattern.permute.xlu0 0
    %76 = vperm.xlu0 %75, %v64
    %v77 = vpop.permute.xlu0 %76
    %78 = vset.pattern.permute.xlu0 0
    %79 = vperm.xlu0 %78, %v65
    %v80 = vpop.permute.xlu0 %79
    %vm81 = vcmp.eq.s32.totalorder %v68, %v60
    %vm82 = vcmp.eq.s32.totalorder %v71, %v60
    %vm83 = vcmp.eq.s32.totalorder %v74, %v60
    %vm84 = vcmp.eq.s32.totalorder %v77, %v60
    %vm85 = vcmp.eq.s32.totalorder %v80, %v60
    %v86 = vsel %vm81, 1, 0
    %v87 = vsel %vm82, 1, 0
    %v88 = vsel %vm83, 1, 0
    %v89 = vsel %vm84, 1, 0
    %v90 = vsel %vm85, 1, 0
    %v91 = vcvt.s32.f32 %v86
    %v92 = vcvt.s32.f32 %v87
    %v93 = vcvt.s32.f32 %v88
    %v94 = vcvt.s32.f32 %v89
    %v95 = vcvt.s32.f32 %v90
    %v96 = vld [vmem:[%s3] sm:$0xff]
    %v97 = vld [vmem:[%s3 + $0x8] sm:$0xff]
    %v98 = vld [vmem:[%s3 + $0x10] sm:$0xff]
    %v99 = vld [vmem:[%s3 + $0x18] sm:$0xff]
    %v100 = vld [vmem:[%s3 + $0x20] sm:$0xff]
    %101 = vset.pattern.permute.xlu0 0
    %102 = vperm.xlu0 %101, %v96
    %v103 = vpop.permute.xlu0 %102
    %104 = vset.pattern.permute.xlu0 0
    %105 = vperm.xlu0 %104, %v97
    %v106 = vpop.permute.xlu0 %105
    %107 = vset.pattern.permute.xlu0 0
    %108 = vperm.xlu0 %107, %v98
    %v109 = vpop.permute.xlu0 %108
    %110 = vset.pattern.permute.xlu0 0
    %111 = vperm.xlu0 %110, %v99
    %v112 = vpop.permute.xlu0 %111
    %113 = vset.pattern.permute.xlu0 0
    %114 = vperm.xlu0 %113, %v100
    %v115 = vpop.permute.xlu0 %114
    %vm116 = vcmp.eq.s32.totalorder %v103, %v60
    %vm117 = vcmp.eq.s32.totalorder %v106, %v60
    %vm118 = vcmp.eq.s32.totalorder %v109, %v60
    %vm119 = vcmp.eq.s32.totalorder %v112, %v60
    %vm120 = vcmp.eq.s32.totalorder %v115, %v60
    %v121 = vsel %vm116, 1, 0
    %v122 = vsel %vm117, 1, 0
    %v123 = vsel %vm118, 1, 0
    %v124 = vsel %vm119, 1, 0
    %v125 = vsel %vm120, 1, 0
    %v126 = vcvt.s32.f32 %v121
    %v127 = vcvt.s32.f32 %v122
    %v128 = vcvt.s32.f32 %v123
    %v129 = vcvt.s32.f32 %v124
    %v130 = vcvt.s32.f32 %v125
    %v131 = vlaneseq
    %v132 = vshrl.u32 %v131, 7
    %v133 = vadd.s32 %v132, 8
    %v134 = vld [vmem:[%s4] sm:$0x1]
    %v135 = vperm.slane %v134, 0
    %vm136 = vcmp.eq.s32.totalorder %v135, %v132
    %vm137 = vcmp.eq.s32.totalorder %v135, %v133
    %v138 = vsel %vm136, 1, 0
    %v139 = vsel %vm137, 1, 0
    %v140 = vcvt.s32.f32 %v138
    %v141 = vcvt.s32.f32 %v139
    %vm142 = vcmask 130048
    %v144 = vsel %vm142, %v91, 0
    %v147 = vsel %vm142, %v92, 0
    %v150 = vsel %vm142, %v93, 0
    %v153 = vsel %vm142, %v94, 0
    %v156 = vsel %vm142, %v95, 0
    %158 = vmatpush.msra.mxu0 0.0
    %159 = vmatpush.msra.mxu0 0.0
    %160 = vmatpush.msra.mxu0 0.0
    %161 = vmatpush.msra.mxu0 0.0
    %162 = vmatpush.msra.mxu0 0.0
    %163 = vmatpush.msra.mxu0 0.0
    %164 = vmatpush.msra.mxu0 0.0
    %165 = vmatpush.msra.mxu0 0.0
    %166 = vmatpush.msra.mxu0 0.0
    %167 = vmatpush.msra.mxu0 0.0
    %168 = vmatpush.msra.mxu0 0.0
    %169 = vmatpush.msra.mxu0 0.0
    %170 = vmatpush.msra.mxu0 0.0
    %171 = vmatpush.msra.mxu0 0.0
    %172 = vmatpush.msra.mxu0 %v53
    %173 = vmatpush.msra.mxu0 %v52
    %174 = vmatmul.f32.gmra.mxu0 %v144
    %v175 = vpop.f32.mrf.mxu0
    %v176 = vadd.f32 0.0, %v175
    %177 = vmatmul.f32.gmra.mxu0 %v147
    %v178 = vpop.f32.mrf.mxu0
    %v179 = vadd.f32 0.0, %v178
    %180 = vmatmul.f32.gmra.mxu0 %v150
    %v181 = vpop.f32.mrf.mxu0
    %v182 = vadd.f32 0.0, %v181
    %183 = vmatmul.f32.gmra.mxu0 %v153
    %v184 = vpop.f32.mrf.mxu0
    %v185 = vadd.f32 0.0, %v184
    %186 = vmatmul.f32.gmra.mxu0 %v156
    %v187 = vpop.f32.mrf.mxu0
    %v188 = vadd.f32 0.0, %v187
    %189 = vdwg.mxu0
    %v191 = vsel %vm142, %v126, 0
    %v194 = vsel %vm142, %v127, 0
    %v197 = vsel %vm142, %v128, 0
    %v200 = vsel %vm142, %v129, 0
    %v203 = vsel %vm142, %v130, 0
    %205 = vmatpush.msra.mxu0 0.0
    %206 = vmatpush.msra.mxu0 0.0
    %207 = vmatpush.msra.mxu0 0.0
    %208 = vmatpush.msra.mxu0 0.0
    %209 = vmatpush.msra.mxu0 0.0
    %210 = vmatpush.msra.mxu0 0.0
    %211 = vmatpush.msra.mxu0 0.0
    %212 = vmatpush.msra.mxu0 0.0
    %213 = vmatpush.msra.mxu0 0.0
    %214 = vmatpush.msra.mxu0 0.0
    %215 = vmatpush.msra.mxu0 0.0
    %216 = vmatpush.msra.mxu0 0.0
    %217 = vmatpush.msra.mxu0 0.0
    %218 = vmatpush.msra.mxu0 0.0
    %219 = vmatpush.msra.mxu0 %v53
    %220 = vmatpush.msra.mxu0 %v52
    %221 = vmatmul.f32.gmra.mxu0 %v191
    %v222 = vpop.f32.mrf.mxu0
    %v223 = vadd.f32 0.0, %v222
    %224 = vmatmul.f32.gmra.mxu0 %v194
    %v225 = vpop.f32.mrf.mxu0
    %v226 = vadd.f32 0.0, %v225
    %227 = vmatmul.f32.gmra.mxu0 %v197
    %v228 = vpop.f32.mrf.mxu0
    %v229 = vadd.f32 0.0, %v228
    %230 = vmatmul.f32.gmra.mxu0 %v200
    %v231 = vpop.f32.mrf.mxu0
    %v232 = vadd.f32 0.0, %v231
    %233 = vmatmul.f32.gmra.mxu0 %v203
    %v234 = vpop.f32.mrf.mxu0
    %v235 = vadd.f32 0.0, %v234
    %236 = vdwg.mxu0
    %v237 = vld [vmem:[%s5] sm:$0xff]
    %v238 = vld [vmem:[%s6] sm:$0xff]
    %vm239 = vcmask 64512
    %v241 = vsel %vm239, %v223, 0
    %v244 = vsel %vm239, %v226, 0
    %v247 = vsel %vm239, %v229, 0
    %v250 = vsel %vm239, %v232, 0
    %v253 = vsel %vm239, %v235, 0
    %255 = vmatpush.msra.mxu0 0.0
    %256 = vmatpush.msra.mxu0 0.0
    %257 = vmatpush.msra.mxu0 0.0
    %258 = vmatpush.msra.mxu0 0.0
    %259 = vmatpush.msra.mxu0 0.0
    %260 = vmatpush.msra.mxu0 0.0
    %261 = vmatpush.msra.mxu0 0.0
    %262 = vmatpush.msra.mxu0 0.0
    %263 = vmatpush.msra.mxu0 0.0
    %264 = vmatpush.msra.mxu0 0.0
    %265 = vmatpush.msra.mxu0 0.0
    %266 = vmatpush.msra.mxu0 0.0
    %267 = vmatpush.msra.mxu0 0.0
    %268 = vmatpush.msra.mxu0 0.0
    %269 = vmatpush.msra.mxu0 0.0
    %270 = vmatpush.msra.mxu0 %v238
    %271 = vmatmul.f32.gmra.mxu0 %v241
    %v272 = vpop.f32.mrf.mxu0
    %v273 = vadd.f32 0.0, %v272
    %274 = vmatmul.f32.gmra.mxu0 %v244
    %v275 = vpop.f32.mrf.mxu0
    %v276 = vadd.f32 0.0, %v275
    %277 = vmatmul.f32.gmra.mxu0 %v247
    %v278 = vpop.f32.mrf.mxu0
    %v279 = vadd.f32 0.0, %v278
    %280 = vmatmul.f32.gmra.mxu0 %v250
    %v281 = vpop.f32.mrf.mxu0
    %v282 = vadd.f32 0.0, %v281
    %283 = vmatmul.f32.gmra.mxu0 %v253
    %v284 = vpop.f32.mrf.mxu0
    %v285 = vadd.f32 0.0, %v284
    %286 = vdwg.mxu0
    %v288 = vsel %vm239, %v176, 0
    %v291 = vsel %vm239, %v179, 0
    %v294 = vsel %vm239, %v182, 0
    %v297 = vsel %vm239, %v185, 0
    %v300 = vsel %vm239, %v188, 0
    %302 = vmatpush.msra.mxu0 0.0
    %303 = vmatpush.msra.mxu0 0.0
    %304 = vmatpush.msra.mxu0 0.0
    %305 = vmatpush.msra.mxu0 0.0
    %306 = vmatpush.msra.mxu0 0.0
    %307 = vmatpush.msra.mxu0 0.0
    %308 = vmatpush.msra.mxu0 0.0
    %309 = vmatpush.msra.mxu0 0.0
    %310 = vmatpush.msra.mxu0 0.0
    %311 = vmatpush.msra.mxu0 0.0
    %312 = vmatpush.msra.mxu0 0.0
    %313 = vmatpush.msra.mxu0 0.0
    %314 = vmatpush.msra.mxu0 0.0
    %315 = vmatpush.msra.mxu0 0.0
    %316 = vmatpush.msra.mxu0 0.0
    %317 = vmatpush.msra.mxu0 %v237
    %318 = vmatmul.f32.gmra.mxu0 %v288
    %v319 = vpop.f32.mrf.mxu0
    %v320 = vadd.f32 %v273, %v319
    %321 = vmatmul.f32.gmra.mxu0 %v291
    %v322 = vpop.f32.mrf.mxu0
    %v323 = vadd.f32 %v276, %v322
    %324 = vmatmul.f32.gmra.mxu0 %v294
    %v325 = vpop.f32.mrf.mxu0
    %v326 = vadd.f32 %v279, %v325
    %327 = vmatmul.f32.gmra.mxu0 %v297
    %v328 = vpop.f32.mrf.mxu0
    %v329 = vadd.f32 %v282, %v328
    %330 = vmatmul.f32.gmra.mxu0 %v300
    %v331 = vpop.f32.mrf.mxu0
    %v332 = vadd.f32 %v285, %v331
    %333 = vdwg.mxu0
    %v334 = vld [vmem:[%s7] sm:$0xf]
    %vm335 = vcmask 31744
    %v337 = vsel %vm335, %v54, 0
    %v340 = vsel %vm335, %v55, 0
    %v343 = vsel %vm335, %v56, 0
    %v346 = vsel %vm335, %v57, 0
    %v349 = vsel %vm335, %v58, 0
    %vm351 = vcmask 1043456
    %v353 = vsel %vm351, %v334, 0
    %355 = vmatpush.msra.mxu0 0.0
    %356 = vmatpush.msra.mxu0 0.0
    %357 = vmatpush.msra.mxu0 0.0
    %358 = vmatpush.msra.mxu0 0.0
    %359 = vmatpush.msra.mxu0 0.0
    %360 = vmatpush.msra.mxu0 0.0
    %361 = vmatpush.msra.mxu0 0.0
    %362 = vmatpush.msra.mxu0 0.0
    %363 = vmatpush.msra.mxu0 0.0
    %364 = vmatpush.msra.mxu0 0.0
    %365 = vmatpush.msra.mxu0 0.0
    %366 = vmatpush.msra.mxu0 0.0
    %367 = vmatpush.msra.mxu0 0.0
    %368 = vmatpush.msra.mxu0 0.0
    %369 = vmatpush.msra.mxu0 0.0
    %370 = vmatpush.msra.mxu0 %v353
    %371 = vmatmul.f32.gmra.mxu0 %v337
    %v372 = vpop.f32.mrf.mxu0
    %v373 = vadd.f32 0.0, %v372
    %374 = vmatmul.f32.gmra.mxu0 %v340
    %v375 = vpop.f32.mrf.mxu0
    %v376 = vadd.f32 0.0, %v375
    %377 = vmatmul.f32.gmra.mxu0 %v343
    %v378 = vpop.f32.mrf.mxu0
    %v379 = vadd.f32 0.0, %v378
    %380 = vmatmul.f32.gmra.mxu0 %v346
    %v381 = vpop.f32.mrf.mxu0
    %v382 = vadd.f32 0.0, %v381
    %383 = vmatmul.f32.gmra.mxu0 %v349
    %v384 = vpop.f32.mrf.mxu0
    %v385 = vadd.f32 0.0, %v384
    %386 = vdwg.mxu0
    %v387 = vadd.f32 %v320, %v373
    %v388 = vadd.f32 %v323, %v376
    %v389 = vadd.f32 %v326, %v379
    %v390 = vadd.f32 %v329, %v382
    %v391 = vadd.f32 %v332, %v385
    %v392 = vld [vmem:[%s8] sm:$0x1]
    %v394 = vperm.slane %v392, 0
    %v396 = vadd.f32 %v387, %v394
    %v397 = vadd.f32 %v388, %v394
    %v398 = vadd.f32 %v389, %v394
    %v399 = vadd.f32 %v390, %v394
    %v400 = vadd.f32 %v391, %v394
    %v401 = vmax.f32 %v396, 0.0
    %v402 = vmax.f32 %v397, 0.0
    %v403 = vmax.f32 %v398, 0.0
    %v404 = vmax.f32 %v399, 0.0
    %v405 = vmax.f32 %v400, 0.0
    %v406 = vld [vmem:[#allocation2] sm:$0xff]
    %v407 = vld [vmem:[#allocation2 + $0x8] sm:$0xff]
    %vm408 = vcmask 326656
    %v410 = vsel %vm408, %v140, 0
    %v413 = vsel %vm408, %v141, 0
    %415 = vmatpush.msra.mxu0 0.0
    %416 = vmatpush.msra.mxu0 0.0
    %417 = vmatpush.msra.mxu0 0.0
    %418 = vmatpush.msra.mxu0 0.0
    %419 = vmatpush.msra.mxu0 0.0
    %420 = vmatpush.msra.mxu0 0.0
    %421 = vmatpush.msra.mxu0 0.0
    %422 = vmatpush.msra.mxu0 0.0
    %423 = vmatpush.msra.mxu0 0.0
    %424 = vmatpush.msra.mxu0 0.0
    %425 = vmatpush.msra.mxu0 0.0
    %426 = vmatpush.msra.mxu0 %v405
    %427 = vmatpush.msra.mxu0 %v404
    %428 = vmatpush.msra.mxu0 %v403
    %429 = vmatpush.msra.mxu0 %v402
    %430 = vmatpush.msra.mxu0 %v401
    %431 = vmatmul.f32.gmra.mxu0 %v410
    %v432 = vpop.f32.mrf.mxu0
    %v433 = vadd.f32 0.0, %v432
    %434 = vmatmul.f32.gmra.mxu0 %v413
    %v435 = vpop.f32.mrf.mxu0
    %v436 = vadd.f32 0.0, %v435
    %437 = vdwg.mxu0
    %v438 = vadd.f32 %v406, %v433
    %v439 = vadd.f32 %v407, %v436
    %vm440 = vcmask 261120
    %441 = vst.msk [vmem:[#allocation2] sm:$0xff] %vm440, %v438
    %442 = vst.msk [vmem:[#allocation2 + $0x8] sm:$0xff] %vm440, %v439
    %v443 = vld [vmem:[#allocation3] sm:$0xff]
    %v444 = vld [vmem:[#allocation3 + $0x8] sm:$0xff]
    %v445 = vsel %vm408, %v140, 0.0
    %446 = vadd.xlane.f32.xlu0 %v445
    %v447 = vpop.xlane.xlu0 %446
    %v448 = vsel %vm408, %v141, 0.0
    %449 = vadd.xlane.f32.xlu0 %v448
    %v450 = vpop.xlane.xlu0 %449
    %v451 = vadd.f32 %v443, %v447
    %v452 = vadd.f32 %v444, %v450
    %vm453 = vcmask 7168
    %454 = vst.msk [vmem:[#allocation3] sm:$0xff] %vm453, %v451
    %455 = vst.msk [vmem:[#allocation3 + $0x8] sm:$0xff] %vm453, %v452
    // Predicated region
    $region54: #{tpu_custom_call.1} parent=1 // pred_check
      %p456 = pneg %p42
    $region55: #{tpu_custom_call.1} parent=1 // pred_check_branch
      %458 = sbr.rel (%p456) target = $region57
    $region56: #{tpu_custom_call.1} parent=1 // pred_region
      %v459 = vld [vmem:[#allocation2] sm:$0xff]
      %v460 = vld [vmem:[#allocation2 + $0x8] sm:$0xff]
      %v461 = vld [vmem:[#allocation3] sm:$0xff]
      %v462 = vld [vmem:[#allocation3 + $0x8] sm:$0xff]
      %v463 = vmax.f32 %v461, 1.0
      %v464 = vmax.f32 %v462, 1.0
      %466 = vset.pattern.permute.xlu0 0
      %467 = vperm.xlu0 %466, %v463
      %v468 = vpop.permute.xlu0 %467
      %471 = vset.pattern.permute.xlu0 0
      %472 = vperm.xlu0 %471, %v464
      %v473 = vpop.permute.xlu0 %472
      %v475 = vrcp.pop %v468
      %v476 = vmul.f32 %v468, %v475
      %v477 = vsub.f32 1.0, %v476
      %v478 = vmul.f32 %v475, %v477
      %v479 = vadd.f32 %v475, %v478
      %vm480 = vweird.f32 %v468
      %vm481 = vweird.f32 %v475
      %vm482 = vmor %vm480, %vm481
      %v483 = vsel %vm482, %v475, %v479
      %v484 = vand.u32 2147483647, %v468
      %vm485 = vcmp.eq.f32.partialorder %v484, 8.507059e+37
      %v486 = vand.u32 %v468, 2147483648
      %v487 = vor.u32 1.1754944e-38, %v486
      %v488 = vsel %vm485, %v487, %v483
      %v489 = vmul.f32 %v459, %v488
      %v490 = vrcp.pop %v473
      %v491 = vmul.f32 %v473, %v490
      %v492 = vsub.f32 1.0, %v491
      %v493 = vmul.f32 %v490, %v492
      %v494 = vadd.f32 %v490, %v493
      %vm495 = vweird.f32 %v473
      %vm496 = vweird.f32 %v490
      %vm497 = vmor %vm495, %vm496
      %v498 = vsel %vm497, %v490, %v494
      %v499 = vand.u32 2147483647, %v473
      %vm500 = vcmp.eq.f32.partialorder %v499, 8.507059e+37
      %v501 = vand.u32 %v473, 2147483648
      %v502 = vor.u32 1.1754944e-38, %v501
      %v503 = vsel %vm500, %v502, %v498
      %v504 = vmul.f32 %v460, %v503
      %v505 = vld [vmem:[%s9] sm:$0xff]
      %v506 = vld [vmem:[%s10] sm:$0xff]
      %v507 = vld [vmem:[%s10 + $0x8] sm:$0xff]
      %v508 = vld [vmem:[%s10 + $0x10] sm:$0xff]
      %v509 = vld [vmem:[%s10 + $0x18] sm:$0xff]
      %v511 = vsel %vm440, %v489, 0
      %v514 = vsel %vm440, %v504, 0
      %516 = vmatpush.msra.mxu0 0.0
      %517 = vmatpush.msra.mxu0 0.0
      %518 = vmatpush.msra.mxu0 0.0
      %519 = vmatpush.msra.mxu0 0.0
      %520 = vmatpush.msra.mxu0 0.0
      %521 = vmatpush.msra.mxu0 0.0
      %522 = vmatpush.msra.mxu0 0.0
      %523 = vmatpush.msra.mxu0 0.0
      %524 = vmatpush.msra.mxu0 0.0
      %525 = vmatpush.msra.mxu0 0.0
      %526 = vmatpush.msra.mxu0 0.0
      %527 = vmatpush.msra.mxu0 0.0
      %528 = vmatpush.msra.mxu0 %v509
      %529 = vmatpush.msra.mxu0 %v508
      %530 = vmatpush.msra.mxu0 %v507
      %531 = vmatpush.msra.mxu0 %v506
      %532 = vmatmul.f32.gmra.mxu0 %v511
      %v533 = vpop.f32.mrf.mxu0
      %v534 = vadd.f32 0.0, %v533
      %535 = vmatmul.f32.gmra.mxu0 %v514
      %v536 = vpop.f32.mrf.mxu0
      %v537 = vadd.f32 0.0, %v536
      %538 = vdwg.mxu0
      %v540 = vsel %vm239, %v52, 0
      %v543 = vsel %vm239, %v53, 0
      %545 = vmatpush.msra.mxu0 0.0
      %546 = vmatpush.msra.mxu0 0.0
      %547 = vmatpush.msra.mxu0 0.0
      %548 = vmatpush.msra.mxu0 0.0
      %549 = vmatpush.msra.mxu0 0.0
      %550 = vmatpush.msra.mxu0 0.0
      %551 = vmatpush.msra.mxu0 0.0
      %552 = vmatpush.msra.mxu0 0.0
      %553 = vmatpush.msra.mxu0 0.0
      %554 = vmatpush.msra.mxu0 0.0
      %555 = vmatpush.msra.mxu0 0.0
      %556 = vmatpush.msra.mxu0 0.0
      %557 = vmatpush.msra.mxu0 0.0
      %558 = vmatpush.msra.mxu0 0.0
      %559 = vmatpush.msra.mxu0 0.0
      %560 = vmatpush.msra.mxu0 %v505
      %561 = vmatmul.f32.gmra.mxu0 %v540
      %v562 = vpop.f32.mrf.mxu0
      %v563 = vadd.f32 %v534, %v562
      %564 = vmatmul.f32.gmra.mxu0 %v543
      %v565 = vpop.f32.mrf.mxu0
      %v566 = vadd.f32 %v537, %v565
      %567 = vdwg.mxu0
      %v568 = vld [vmem:[%s11] sm:$0x1]
      %v570 = vperm.slane %v568, 0
      %v572 = vadd.f32 %v563, %v570
      %v573 = vadd.f32 %v566, %v570
      %v574 = vmax.f32 %v572, 0.0
      %v575 = vmax.f32 %v573, 0.0
      %576 = vst.msk [vmem:[#allocation4] sm:$0xff] %vm440, %v574
      %577 = vst.msk [vmem:[#allocation4 + $0x8] sm:$0xff] %vm440, %v575
    $region57: #{tpu_custom_call.1} parent=1 // pred_fallthru
      _
    // Predicated region
    $region58: #{tpu_custom_call.1} parent=1 // pred_check
      _
    $region59: #{tpu_custom_call.1} parent=1 // pred_check_branch
      %579 = sbr.rel (0) target = $region61
    $region60: #{tpu_custom_call.1} parent=1 // pred_region
      %581 = vsyncadd [#allocation5], 0
      %s582 = sshll.u32 [#allocation4], 4
      %s583 = int_to_ptr.vmem [resolvable:$true] %s582
      %s584 = sshll.u32 %s12, 4
      %s585 = int_to_ptr.hbm [resolvable:$true] %s584
      %590 = dma.vmem_to_hbm [thread:$0]  %s583, 256, %s585, [#allocation5], 128, 128, 8
    $region61: #{tpu_custom_call.1} parent=1 // pred_fallthru
      _
    // Predicated region
    $region62: #{tpu_custom_call.1} parent=1 // pred_check
      _
    $region63: #{tpu_custom_call.1} parent=1 // pred_check_branch
      %592 = sbr.rel (0) target = $region65
    $region64: #{tpu_custom_call.1} parent=1 // pred_region
      %594 = dma.done [#allocation5], 256
    $region65: #{tpu_custom_call.1} parent=1 // pred_fallthru
      _
    %595 = vsyncpa [#allocation5], 1

</llo_original>
